<compile_context>
chip_gen: v5e
topology: v5e:2x2
jax: 0.10.0
libtpu: 0.0.40
codegen_flags: <defaults>
</compile_context>

<pallas_src>
import functools

import jax
import jax.numpy as jnp
from jax.experimental import pallas as pl
from jax.experimental.pallas import tpu as pltpu


# ----------------------------------------------------------------------------
# Pallas kernel: matmul + bias + activation (the hot path of every layer)
# ----------------------------------------------------------------------------
def _matmul_bias_act_kernel(a_ref, b_ref, bias_ref, o_ref, *, act):
    acc = jnp.dot(a_ref[...], b_ref[...], preferred_element_type=jnp.float32)
    acc = acc + bias_ref[...]                     # (1, tn) broadcasts over rows
    if act == "relu":
        acc = jnp.maximum(acc, 0.0)
    elif act == "sigmoid":
        acc = jax.nn.sigmoid(acc)
    o_ref[...] = acc.astype(o_ref.dtype)


def _round_up(x, m):
    return ((x + m - 1) // m) * m


def _cdiv(a, b):
    return -(-a // b)


def _pick_tiles(M, K, N):
    """Pick (tm, tn) so the whole K reduction fits in ONE grid step.

    * tm: balanced ~<=1024-row, 16-aligned blocks (minimal M padding), also
      capped so an A block stays <= ~4 MiB even for K=4500.
    * tn: full N (all layers have N <= 512) -> no N padding, lane-dense stores.
    * If that yields a single grid block, split N (128-multiples) or M so the
      two v7x TensorCores both get work; near-free on v5e/v6e.
    """
    tm_cap = max(16, (((4 << 20) // (2 * K)) // 16) * 16)
    mb = max(1, _cdiv(M, 1024))
    tm = min(M, _round_up(_cdiv(M, mb), 16), tm_cap)
    tn = N
    m_blocks = _cdiv(M, tm)
    n_blocks = 1
    if m_blocks * n_blocks == 1:
        if N % 256 == 0 and N >= 256:
            tn, n_blocks = N // 2, 2
        elif M > 16:
            tm = _round_up(_cdiv(M, 2), 16)
            m_blocks = _cdiv(M, tm)
    return tm, tn


def pallas_matmul_bias_act(a, b, bias, act, out_dtype=jnp.float32,
                           operand_dtype=jnp.bfloat16):
    """out = act(a @ b + bias); operands on the MXU in `operand_dtype`,
    fp32 accumulation + fp32 epilogue."""
    M, K = a.shape
    K2, N = b.shape
    assert K == K2
    tm, tn = _pick_tiles(M, K, N)
    m_blocks, n_blocks = _cdiv(M, tm), _cdiv(N, tn)
    Mp = m_blocks * tm

    a = a.astype(operand_dtype)
    b = b.astype(operand_dtype)
    bias = bias.astype(jnp.float32).reshape(1, N)
    if Mp != M:
        a = jnp.pad(a, ((0, Mp - M), (0, 0)))

    out_bytes = Mp * N * jnp.dtype(out_dtype).itemsize
    cost = pl.CostEstimate(
        flops=2 * M * K * N,
        transcendentals=(M * N if act == "sigmoid" else 0),
        bytes_accessed=(a.size * a.dtype.itemsize + b.size * b.dtype.itemsize
                        + bias.size * 4 + out_bytes),
    )

    out = pl.pallas_call(
        functools.partial(_matmul_bias_act_kernel, act=act),
        out_shape=jax.ShapeDtypeStruct((Mp, N), out_dtype),
        grid=(m_blocks, n_blocks),
        in_specs=[
            pl.BlockSpec((tm, K), lambda i, j: (i, 0)),   # full-extent K block
            pl.BlockSpec((K, tn), lambda i, j: (0, j)),
            pl.BlockSpec((1, tn), lambda i, j: (0, j)),
        ],
        out_specs=pl.BlockSpec((tm, tn), lambda i, j: (i, j)),
        compiler_params=pltpu.CompilerParams(
            dimension_semantics=("parallel", "parallel")),
        cost_estimate=cost,
    )(a, b, bias)
    if Mp != M:
        out = out[:M]
    return out


# ----------------------------------------------------------------------------
# Conv / ConvTranspose lowered to im2col + the Pallas matmul kernel
# ----------------------------------------------------------------------------
def _im2col(x, kh, kw, stride):
    """x: (N, H, W, C) already spatially padded -> (N*Ho*Wo, kh*kw*C)."""
    N, H, W, C = x.shape
    Ho = (H - kh) // stride + 1
    Wo = (W - kw) // stride + 1
    patches = []
    for i in range(kh):
        for j in range(kw):
            patches.append(
                x[:, i: i + stride * Ho: stride, j: j + stride * Wo: stride, :]
            )
    cols = jnp.stack(patches, axis=3)               # (N, Ho, Wo, kh*kw, C)
    return cols.reshape(N * Ho * Wo, kh * kw * C), Ho, Wo


def conv2d(x, w, b, stride, padding, act, out_dtype=jnp.float32,
           operand_dtype=jnp.bfloat16):
    """x: NHWC;  w: PyTorch Conv2d layout (Cout, Cin, KH, KW)."""
    Cout, Cin, KH, KW = w.shape
    xp = x
    if padding > 0:
        xp = jnp.pad(x, ((0, 0), (padding, padding), (padding, padding), (0, 0)))
    cols, Ho, Wo = _im2col(xp, KH, KW, stride)
    wm = jnp.transpose(w, (2, 3, 1, 0)).reshape(KH * KW * Cin, Cout)
    out = pallas_matmul_bias_act(cols, wm, b, act, out_dtype, operand_dtype)
    return out.reshape(x.shape[0], Ho, Wo, Cout)


def conv_transpose2d(x, w, b, stride, padding, act, out_dtype=jnp.float32,
                     operand_dtype=jnp.bfloat16):
    """x: NHWC;  w: PyTorch ConvTranspose2d layout (Cin, Cout, KH, KW)."""
    Cin, Cout, KH, KW = w.shape
    if stride == 1:
        # Equivalent ordinary convolution: flip spatially, swap in/out channels.
        w_conv = jnp.transpose(jnp.flip(w, (2, 3)), (1, 0, 2, 3))
        return conv2d(x, w_conv, b, stride=1, padding=KH - 1 - padding,
                      act=act, out_dtype=out_dtype, operand_dtype=operand_dtype)

    # Subpixel (phase) decomposition for the k=4 / stride=2 / pad=1 layers:
    # each output parity (ph, pw) is a 2x2 stride-1 conv over the 1-padded
    # input; all four phases share the same im2col patches, so their weights
    # are stacked along N and computed in ONE Pallas matmul.
    assert stride == 2 and KH == 4 and KW == 4 and padding == 1
    Nb, H, W, _ = x.shape
    xp = jnp.pad(x, ((0, 0), (1, 1), (1, 1), (0, 0)))
    cols, Ho, Wo = _im2col(xp, 2, 2, 1)              # Ho = H+1, Wo = W+1
    # Kernel tap th of phase ph uses original tap kh = 3 - ph - 2*th.
    tap = jnp.array([[3, 1], [2, 0]], dtype=jnp.int32)       # [phase, tap]
    w_sel = w[:, :, tap, :][:, :, :, :, tap]         # (Cin, Cout, ph, th, pw, tw)
    # Fold the phase reversal into the weight matrix so the matmul's N axis is
    # already ordered (q, t, Cout) with (ph, pw) = (1-q, 1-t): the output then
    # interleaves with a plain reshape/transpose (no per-phase slicing).
    w_sel = w_sel[:, :, ::-1, :, ::-1, :]
    wm = jnp.transpose(w_sel, (3, 5, 0, 2, 4, 1)).reshape(4 * Cin, 4 * Cout)
    bias4 = jnp.tile(b, 4)
    y = pallas_matmul_bias_act(cols, wm, bias4, act, out_dtype, operand_dtype)
    # y[:, r, s, q, t, :] is phase (1-q, 1-t) at base (r, s); interleaving gives
    # an extended grid indexed by (2r+q, 2s+t) whose interior [1:2H+1, 1:2W+1]
    # is the true ConvTranspose output.
    y = y.reshape(Nb, Ho, Wo, 2, 2, Cout)
    y = jnp.transpose(y, (0, 1, 3, 2, 4, 5)).reshape(Nb, 2 * Ho, 2 * Wo, Cout)
    return y[:, 1:1 + 2 * H, 1:1 + 2 * W, :]


# ----------------------------------------------------------------------------
# Autoencoder definition (shapes exactly match the PyTorch module)
# ----------------------------------------------------------------------------
#        (Cin, Cout, K, stride, pad, activation)
ENCODER_CFG = [
    (1, 32, 4, 2, 1, "relu"),
    (32, 64, 4, 2, 1, "relu"),
    (64, 128, 4, 2, 1, "relu"),
    (128, 64, 4, 2, 1, "relu"),
    (64, 128, 4, 2, 1, "relu"),
    (128, 500, 3, 1, 0, "none"),
]
DECODER_CFG = [
    (500, 128, 3, 1, 0, "relu"),
    (128, 64, 4, 2, 1, "relu"),
    (64, 128, 4, 2, 1, "relu"),
    (128, 64, 4, 2, 1, "relu"),
    (64, 32, 4, 2, 1, "relu"),
    (32, 1, 4, 2, 1, "sigmoid"),
]


def init_params(key):
    params = {"enc": [], "dec": []}
    for cin, cout, k, _, _, _ in ENCODER_CFG:
        key, kw_, kb_ = jax.random.split(key, 3)
        bound = 1.0 / (cin * k * k) ** 0.5
        w = jax.random.uniform(kw_, (cout, cin, k, k), jnp.float32, -bound, bound)
        b = jax.random.uniform(kb_, (cout,), jnp.float32, -bound, bound)
        params["enc"].append((w, b))
    for cin, cout, k, _, _, _ in DECODER_CFG:
        key, kw_, kb_ = jax.random.split(key, 3)
        bound = 1.0 / (cout * k * k) ** 0.5
        w = jax.random.uniform(kw_, (cin, cout, k, k), jnp.float32, -bound, bound)
        b = jax.random.uniform(kb_, (cout,), jnp.float32, -bound, bound)
        params["dec"].append((w, b))
    return params


@jax.jit
def autoencoder_forward(x_nchw, params):
    x = jnp.transpose(x_nchw, (0, 2, 3, 1)).astype(jnp.bfloat16)  # NCHW -> NHWC
    for (w, b), (_, _, _, s, p, act) in zip(params["enc"], ENCODER_CFG):
        x = conv2d(x, w, b, stride=s, padding=p, act=act, out_dtype=jnp.bfloat16)
    n_dec = len(DECODER_CFG)
    for li, ((w, b), (_, _, _, s, p, act)) in enumerate(
            zip(params["dec"], DECODER_CFG)):
        out_dt = jnp.float32 if li == n_dec - 1 else jnp.bfloat16
        x = conv_transpose2d(x, w, b, stride=s, padding=p, act=act,
                             out_dtype=out_dt)
    return jnp.transpose(x, (0, 3, 1, 2))            # NHWC -> NCHW


# ----------------------------------------------------------------------------
# Pure-JAX references (lax.conv) for numerical validation
# ----------------------------------------------------------------------------
def _ref_conv2d(x, w, b, stride, padding):
    w_hwio = jnp.transpose(w, (2, 3, 1, 0))          # (KH, KW, Cin, Cout)
    y = jax.lax.conv_general_dilated(
        x, w_hwio, window_strides=(stride, stride),
        padding=[(padding, padding), (padding, padding)],
        dimension_numbers=("NHWC", "HWIO", "NHWC"),
        precision=jax.lax.Precision.HIGHEST)
    return y + b


def _ref_conv_transpose2d(x, w, b, stride, padding):
    K = w.shape[2]
    w_hwio = jnp.transpose(jnp.flip(w, (2, 3)), (2, 3, 0, 1))  # (KH, KW, Cin, Cout)
    pad = K - 1 - padding
    y = jax.lax.conv_general_dilated(
        x, w_hwio, window_strides=(1, 1),
        padding=[(pad, pad), (pad, pad)],
        lhs_dilation=(stride, stride),
        dimension_numbers=("NHWC", "HWIO", "NHWC"),
        precision=jax.lax.Precision.HIGHEST)
    return y + b


@jax.jit
def reference_forward(x_nchw, params):
    x = jnp.transpose(x_nchw, (0, 2, 3, 1))
    for (w, b), (_, _, _, s, p, act) in zip(params["enc"], ENCODER_CFG):
        x = _ref_conv2d(x, w, b, s, p)
        if act == "relu":
            x = jax.nn.relu(x)
    for (w, b), (_, _, _, s, p, act) in zip(params["dec"], DECODER_CFG):
        x = _ref_conv_transpose2d(x, w, b, s, p)
        if act == "relu":
            x = jax.nn.relu(x)
        elif act == "sigmoid":
            x = jax.nn.sigmoid(x)
    return jnp.transpose(x, (0, 3, 1, 2))


def _check_layers(key):
    """fp32 numerical validation of the conv / conv-transpose lowerings."""
    k = jax.random.split(key, 9)
    # Conv2d k=4, s=2, p=1
    x = jax.random.normal(k[0], (2, 6, 8, 8), jnp.float32)
    w = 0.2 * jax.random.normal(k[1], (16, 8, 4, 4), jnp.float32)
    b = 0.2 * jax.random.normal(k[2], (16,), jnp.float32)
    got = conv2d(x, w, b, 2, 1, "none", jnp.float32, jnp.float32)
    ref = _ref_conv2d(x, w, b, 2, 1)
    assert jnp.allclose(got, ref, atol=2e-3, rtol=2e-3), "conv2d mismatch"
    # ConvTranspose2d k=4, s=2, p=1 (phase decomposition)
    x = jax.random.normal(k[3], (2, 5, 6, 8), jnp.float32)
    w = 0.2 * jax.random.normal(k[4], (8, 16, 4, 4), jnp.float32)
    b = 0.2 * jax.random.normal(k[5], (16,), jnp.float32)
    got = conv_transpose2d(x, w, b, 2, 1, "none", jnp.float32, jnp.float32)
    ref = _ref_conv_transpose2d(x, w, b, 2, 1)
    assert jnp.allclose(got, ref, atol=2e-3, rtol=2e-3), "convT s=2 mismatch"
    # ConvTranspose2d k=3, s=1, p=0
    x = jax.random.normal(k[6], (2, 3, 3, 8), jnp.float32)
    w = 0.2 * jax.random.normal(k[7], (8, 16, 3, 3), jnp.float32)
    b = 0.2 * jax.random.normal(k[8], (16,), jnp.float32)
    got = conv_transpose2d(x, w, b, 1, 0, "none", jnp.float32, jnp.float32)
    ref = _ref_conv_transpose2d(x, w, b, 1, 0)
    assert jnp.allclose(got, ref, atol=2e-3, rtol=2e-3), "convT s=1 mismatch"


if __name__ == "__main__":
    # Validate the conv lowerings (incl. the phase decomposition) numerically.
    _check_layers(jax.random.PRNGKey(1))

    # Smallest spatial size the architecture supports is 96
    # (96 -> 48 -> 24 -> 12 -> 6 -> 3 -> 1 bottleneck, mirrored back to 96).
    x = jax.random.uniform(jax.random.PRNGKey(0), (2, 1, 96, 96), jnp.float32)
    params = init_params(jax.random.PRNGKey(42))

    y = jax.block_until_ready(autoencoder_forward(x, params))

    assert y.shape == x.shape, y.shape
    assert bool(jnp.all(jnp.isfinite(y)))
    assert bool(jnp.all((y >= 0.0) & (y <= 1.0)))    # sigmoid output range

    # End-to-end check vs. a pure-JAX fp32 reference (bf16 pipeline tolerance).
    y_ref = jax.block_until_ready(reference_forward(x, params))
    err = float(jnp.max(jnp.abs(y - y_ref)))
    assert err < 5e-2, f"forward mismatch vs lax reference: {err}"

    print("KERNEL_OK")
</pallas_src>

<mosaic_0001>
module attributes {stable_mosaic.version = 11 : i64} {
  func.func @_matmul_bias_act_kernel(%arg0: i32, %arg1: i32, %arg2: memref<16x128xf32, #tpu.memory_space<vmem>>, %arg3: memref<128x16xf32, #tpu.memory_space<vmem>>, %arg4: memref<1x16xf32, #tpu.memory_space<vmem>>, %arg5: memref<16x16xf32, #tpu.memory_space<vmem>>) attributes {dimension_semantics = [#tpu.dimension_semantics<parallel>, #tpu.dimension_semantics<parallel>], iteration_bounds = array<i64: 2, 1>, scalar_prefetch = 0 : i64, scratch_operands = 0 : i64, tpu.core_type = #tpu.core_type<tc>, window_params = [{transform_indices = @transform_0, window_bounds = array<i64: 16, 128>}, {transform_indices = @transform_1, window_bounds = array<i64: 128, 16>}, {transform_indices = @transform_2, window_bounds = array<i64: 1, 16>}, {transform_indices = @transform_3, window_bounds = array<i64: 16, 16>}]} {
    %c0 = arith.constant 0 : index
    %c0_0 = arith.constant 0 : index
    %0 = vector.load %arg2[%c0, %c0_0] : memref<16x128xf32, #tpu.memory_space<vmem>>, vector<16x128xf32>
    %c0_1 = arith.constant 0 : index
    %c0_2 = arith.constant 0 : index
    %1 = vector.load %arg3[%c0_1, %c0_2] : memref<128x16xf32, #tpu.memory_space<vmem>>, vector<128x16xf32>
    %cst = arith.constant dense<0.000000e+00> : vector<16x16xf32>
    %2 = tpu.matmul %0, %1, %cst {dimension_numbers = #tpu.dot_dimension_numbers<[1], [0], [0], [1], [0, 0, 1, 1], [], []>} : vector<16x128xf32>, vector<128x16xf32>, vector<16x16xf32> -> vector<16x16xf32>
    %c0_3 = arith.constant 0 : index
    %c0_4 = arith.constant 0 : index
    %3 = vector.load %arg4[%c0_3, %c0_4] : memref<1x16xf32, #tpu.memory_space<vmem>>, vector<1x16xf32>
    %4 = vector.broadcast %3 : vector<1x16xf32> to vector<16x16xf32>
    %5 = arith.addf %2, %4 : vector<16x16xf32>
    %c0_5 = arith.constant 0 : index
    %c0_6 = arith.constant 0 : index
    %6 = vector.load %arg5[%c0_5, %c0_6] : memref<16x16xf32, #tpu.memory_space<vmem>>, vector<16x16xf32>
    tpu.vector_store %arg5[%c0_5, %c0_6], %5 {strides = array<i32>} : memref<16x16xf32, #tpu.memory_space<vmem>>, vector<16x16xf32>,
    return
  }
  func.func @transform_0(%arg0: i32, %arg1: i32) -> (i32, i32) {
    %c0_i32 = arith.constant 0 : i32
    %c0_i32_0 = arith.constant 0 : i32
    return %arg0, %c0_i32 : i32, i32
  }
  func.func @transform_1(%arg0: i32, %arg1: i32) -> (i32, i32) {
    %c0_i32 = arith.constant 0 : i32
    %c0_i32_0 = arith.constant 0 : i32
    return %c0_i32, %arg1 : i32, i32
  }
  func.func @transform_2(%arg0: i32, %arg1: i32) -> (i32, i32) {
    %c0_i32 = arith.constant 0 : i32
    %c0_i32_0 = arith.constant 0 : i32
    return %c0_i32, %arg1 : i32, i32
  }
  func.func @transform_3(%arg0: i32, %arg1: i32) -> (i32, i32) {
    %c0_i32 = arith.constant 0 : i32
    return %arg0, %arg1 : i32, i32
  }
}

</mosaic_0001>

<llo_original>
// kernel: tpu_custom_call.1
$region0: #{tpu_custom_call.1}
  #allocation0 [shape = 'u32[]', space=smem, size = 0x4, offset = 0x4, fixed_abs, tag = 'smem constant byte address 0x4 - core index']
  #allocation1 [shape = 'u32[72,128]{1,0:T(1,128)}', space=vmem, size = 0x9000, scoped, tag = 'internal scratch']
  %s0 = inlined_call_operand.vmem [shape: f32[32,128], index: 0, kind: input, shape index: {}]
  %s1 = inlined_call_operand.vmem [shape: f32[128,16], index: 1, kind: input, shape index: {}]
  %s2 = inlined_call_operand.vmem [shape: f32[1,16], index: 2, kind: input, shape index: {}]
  %s3 = inlined_call_operand.vmem [shape: f32[32,16], index: 3, kind: output, shape index: {}]
  %s4 = sld [smem:[#allocation0]]
  $region45: #{tpu_custom_call.1} parent=0
    _
  %s6 = ssub.s32 1, %s4
  %s7 = scalar_select 0, %s6, %s4
  loop: start=0, step=1, limit=4
  $region2: #{tpu_custom_call.1} parent=0 // loop_pre_header
    _
  $region3: #{tpu_custom_call.1} parent=0 // loop_header
    %s9 = sphi 0, %s13
    %p10 = scmp.ge.s32.totalorder %s9, 4
    %s16 = sphi 0, %s28
    %s17 = sphi 0, %s24
    %s18 = sphi 0, %s16
    %s19 = sphi 0, %s17
    %s20 = sphi 0, %s18
    %s21 = sphi 0, %s19
    %s31 = sphi 0, %s33
    %s34 = sphi 0, %s31
    %s35 = sphi 0, %s34
    %s51 = sphi 0, %s35
    %s57 = sphi 0, %s59
    %s60 = sphi 0, %s57
    %s61 = sphi 0, %s60
    %s77 = sphi 0, %s61
    %s83 = sphi 0, %s85
    %s86 = sphi 0, %s83
    %s87 = sphi 0, %s86
    %s103 = sphi 0, %s87
    %s111 = sphi 0, %s113
    %s114 = sphi 0, %s111
    %s115 = sphi 0, %s114
    %s131 = sphi 0, %s115
  $region4: #{tpu_custom_call.1} parent=0 // loop_header_branch
    %12 = sbr.rel (%p10) target = $region8
  $region5: #{tpu_custom_call.1} parent=0 // loop_body
    %s14 = ssub.s32 %s9, 1
    %s15 = ssub.s32 %s9, 2
    %s22 = sadd.s32 1, %s17
    %p23 = scmp.ge.s32.totalorder %s22, 1
    %s24 = scalar_select %p23, 0, %s22
    %s25 = sadd.s32 1, %s16
    %s26 = scalar_select %p23, %s25, %s16
    %p27 = scmp.ge.s32.totalorder %s26, 2
    %s28 = scalar_select %p27, 0, %s26
    %s29 = ssub.s32 %s16, %s28
    %p30 = scmp.eq.s32.totalorder %s29, 0
    %s32 = sadd.s32 %s31, 1
    %s33 = scalar_select %p30, %s31, %s32
    %p36 = pneg %p30
    %p37 = scmp.eq.s32.totalorder %s9, 1
    %p38 = por %p36, %p37
    %p39 = scmp.ne.s32.totalorder %s31, %s34
    %p40 = scmp.eq.s32.totalorder %s9, 0
    %p41 = por %p39, %p40
    %p42 = scmp.ne.s32.totalorder %s31, %s34
    %p43 = scmp.eq.s32.totalorder %s14, 1
    %p44 = por %p42, %p43
    %p45 = scmp.ne.s32.totalorder %s34, %s35
    %p46 = scmp.eq.s32.totalorder %s14, 0
    %p47 = por %p45, %p46
    %p48 = scmp.ne.s32.totalorder %s34, %s35
    %p49 = scmp.eq.s32.totalorder %s15, 1
    %p50 = por %p48, %p49
    %p52 = scmp.ne.s32.totalorder %s35, %s51
    %p53 = scmp.eq.s32.totalorder %s15, 0
    %p54 = por %p52, %p53
    %s55 = ssub.s32 %s17, %s24
    %p56 = scmp.eq.s32.totalorder %s55, 0
    %s58 = sadd.s32 %s57, 1
    %s59 = scalar_select %p56, %s57, %s58
    %p62 = pneg %p56
    %p63 = scmp.eq.s32.totalorder %s9, 1
    %p64 = por %p62, %p63
    %p65 = scmp.ne.s32.totalorder %s57, %s60
    %p66 = scmp.eq.s32.totalorder %s9, 0
    %p67 = por %p65, %p66
    %p68 = scmp.ne.s32.totalorder %s57, %s60
    %p69 = scmp.eq.s32.totalorder %s14, 1
    %p70 = por %p68, %p69
    %p71 = scmp.ne.s32.totalorder %s60, %s61
    %p72 = scmp.eq.s32.totalorder %s14, 0
    %p73 = por %p71, %p72
    %p74 = scmp.ne.s32.totalorder %s60, %s61
    %p75 = scmp.eq.s32.totalorder %s15, 1
    %p76 = por %p74, %p75
    %p78 = scmp.ne.s32.totalorder %s61, %s77
    %p79 = scmp.eq.s32.totalorder %s15, 0
    %p80 = por %p78, %p79
    %s81 = ssub.s32 %s17, %s24
    %p82 = scmp.eq.s32.totalorder %s81, 0
    %s84 = sadd.s32 %s83, 1
    %s85 = scalar_select %p82, %s83, %s84
    %p88 = pneg %p82
    %p89 = scmp.eq.s32.totalorder %s9, 1
    %p90 = por %p88, %p89
    %p91 = scmp.ne.s32.totalorder %s83, %s86
    %p92 = scmp.eq.s32.totalorder %s9, 0
    %p93 = por %p91, %p92
    %p94 = scmp.ne.s32.totalorder %s83, %s86
    %p95 = scmp.eq.s32.totalorder %s14, 1
    %p96 = por %p94, %p95
    %p97 = scmp.ne.s32.totalorder %s86, %s87
    %p98 = scmp.eq.s32.totalorder %s14, 0
    %p99 = por %p97, %p98
    %p100 = scmp.ne.s32.totalorder %s86, %s87
    %p101 = scmp.eq.s32.totalorder %s15, 1
    %p102 = por %p100, %p101
    %p104 = scmp.ne.s32.totalorder %s87, %s103
    %p105 = scmp.eq.s32.totalorder %s15, 0
    %p106 = por %p104, %p105
    %s107 = ssub.s32 %s16, %s28
    %s108 = ssub.s32 %s17, %s24
    %s109 = sor.u32 %s107, %s108
    %p110 = scmp.eq.s32.totalorder %s109, 0
    %s112 = sadd.s32 %s111, 1
    %s113 = scalar_select %p110, %s111, %s112
    %p116 = pneg %p110
    %p117 = scmp.eq.s32.totalorder %s9, 1
    %p118 = por %p116, %p117
    %p119 = scmp.ne.s32.totalorder %s111, %s114
    %p120 = scmp.eq.s32.totalorder %s9, 0
    %p121 = por %p119, %p120
    %p122 = scmp.ne.s32.totalorder %s111, %s114
    %p123 = scmp.eq.s32.totalorder %s14, 1
    %p124 = por %p122, %p123
    %p125 = scmp.ne.s32.totalorder %s114, %s115
    %p126 = scmp.eq.s32.totalorder %s14, 0
    %p127 = por %p125, %p126
    %p128 = scmp.ne.s32.totalorder %s114, %s115
    %p129 = scmp.eq.s32.totalorder %s15, 1
    %p130 = por %p128, %p129
    %p132 = scmp.ne.s32.totalorder %s115, %s131
    %p133 = scmp.eq.s32.totalorder %s15, 0
    %p134 = por %p132, %p133
    %p135 = scmp.le.s32.totalorder 1, %s9
    %p136 = scmp.lt.s32.totalorder %s9, 3
    %p137 = pnand %p135, %p136
    %p138 = pneg %p137
    // Predicated region
    $region9: #{tpu_custom_call.1} parent=5 // pred_check
      _
    $region10: #{tpu_custom_call.1} parent=5 // pred_check_branch
      %140 = sbr.rel (%p137) target = $region12
    $region11: #{tpu_custom_call.1} parent=5 // pred_region
      %s141 = ssub.s32 %s9, 1
      // Predicated region
      $region13: #{tpu_custom_call.1} parent=11 // pred_check
        %p142 = pneg %p73
      $region14: #{tpu_custom_call.1} parent=11 // pred_check_branch
        %144 = sbr.rel (%p142) target = $region16
      $region15: #{tpu_custom_call.1} parent=11 // pred_region
        %p145 = scmp.lt.s32.totalorder %s19, 0
        %s146 = scalar_select %p145, %s19, 0
        %s147 = smul.addr %s146, 8
        %s148 = scalar_lea.vmem %s1, %s147
      $region16: #{tpu_custom_call.1} parent=11 // pred_fallthru
        _
      // Predicated region
      $region17: #{tpu_custom_call.1} parent=11 // pred_check
        %p149 = pneg %p99
      $region18: #{tpu_custom_call.1} parent=11 // pred_check_branch
        %151 = sbr.rel (%p149) target = $region20
      $region19: #{tpu_custom_call.1} parent=11 // pred_region
        %p152 = scmp.lt.s32.totalorder %s19, 0
        %s153 = scalar_select %p152, %s19, 0
        %s154 = scalar_lea.vmem %s2, %s153
      $region20: #{tpu_custom_call.1} parent=11 // pred_fallthru
        _
    $region12: #{tpu_custom_call.1} parent=5 // pred_fallthru
      _
    %p155 = scmp.lt.s32.totalorder %s9, 2
    // Predicated region
    $region21: #{tpu_custom_call.1} parent=5 // pred_check
      %p156 = pneg %p155
    $region22: #{tpu_custom_call.1} parent=5 // pred_check_branch
      %158 = sbr.rel (%p156) target = $region24
    $region23: #{tpu_custom_call.1} parent=5 // pred_region
      // Predicated region
      $region25: #{tpu_custom_call.1} parent=23 // pred_check
        %p159 = pneg %p41
      $region26: #{tpu_custom_call.1} parent=23 // pred_check_branch
        %161 = sbr.rel (%p159) target = $region28
      $region27: #{tpu_custom_call.1} parent=23 // pred_region
        %s162 = smul.u32 2, %s16
        %p163 = scmp.lt.s32.totalorder %s162, 3
        %s164 = scalar_select %p163, %s162, 3
        %s165 = smul.addr %s164, 8
        %s166 = scalar_lea.vmem %s0, %s165
        %s167 = smul.u32 2, %s16
      $region28: #{tpu_custom_call.1} parent=23 // pred_fallthru
        _
    $region24: #{tpu_custom_call.1} parent=5 // pred_fallthru
      _
    %p168 = scmp.le.s32.totalorder 1, %s9
    %p169 = scmp.lt.s32.totalorder %s9, 3
    %p170 = pnand %p168, %p169
    %p171 = pneg %p170
    // Predicated region
    $region29: #{tpu_custom_call.1} parent=5 // pred_check
      _
    $region30: #{tpu_custom_call.1} parent=5 // pred_check_branch
      %173 = sbr.rel (%p170) target = $region32
    $region31: #{tpu_custom_call.1} parent=5 // pred_region
      %s174 = ssub.s32 %s9, 1
      %s175 = smul.u32 2, %s18
      %p176 = scmp.lt.s32.totalorder %s175, 3
      %s177 = scalar_select %p176, %s175, 3
      %s178 = smul.addr %s177, 8
      %s179 = scalar_lea.vmem %s0, %s178
      %p180 = pneg %p47
      %p181 = pneg %p44
      %p182 = scmp.lt.s32.totalorder %s19, 0
      %s183 = scalar_select %p182, %s19, 0
      %s184 = smul.addr %s183, 8
      %s185 = scalar_lea.vmem %s1, %s184
      %p186 = pneg %p73
      %p187 = pneg %p70
      %p188 = scmp.lt.s32.totalorder %s19, 0
      %s189 = scalar_select %p188, %s19, 0
      %s190 = scalar_lea.vmem %s2, %s189
      %p191 = pneg %p99
      %p192 = pneg %p96
      %p193 = pneg %p127
      %p194 = pneg %p124
      %s195 = smul.u32 2, %s18
      %p196 = scmp.lt.s32.totalorder %s195, 3
      %s197 = scalar_select %p196, %s195, 3
      %p198 = scmp.lt.s32.totalorder %s19, 0
      %s199 = scalar_select %p198, %s19, 0
      %s200 = sadd.s32 %s199, %s197
      %s201 = smul.addr %s200, 8
      %s202 = scalar_lea.vmem %s3, %s201
      %s203 = smul.u32 2, %s18
      %p204 = scmp.lt.s32.totalorder %s203, 3
      %s205 = scalar_select %p204, %s203, 3
      %s206 = smul.addr %s205, 8
      %s207 = scalar_lea.vmem %s0, %s206
      %s208 = smul.u32 2, %s18
      %p209 = scmp.lt.s32.totalorder %s19, 0
      %s210 = scalar_select %p209, %s19, 0
      %s211 = smul.addr %s210, 8
      %s212 = scalar_lea.vmem %s1, %s211
      %p213 = scmp.lt.s32.totalorder %s19, 0
      %s214 = scalar_select %p213, %s19, 0
      %s215 = scalar_lea.vmem %s2, %s214
      %s216 = smul.u32 2, %s18
      %p217 = scmp.lt.s32.totalorder %s216, 3
      %s218 = scalar_select %p217, %s216, 3
      %p219 = scmp.lt.s32.totalorder %s19, 0
      %s220 = scalar_select %p219, %s19, 0
      %s221 = sadd.s32 %s220, %s218
      %s222 = smul.addr %s221, 8
      %s223 = scalar_lea.vmem %s3, %s222
      %s224 = smul.u32 2, %s18
      %v225 = vld [vmem:[%s207] sm:$0xff]
      %v226 = vld [vmem:[%s207 + $0x8] sm:$0xff]
      %v227 = vld [vmem:[%s212] sm:$0xff]
      %v228 = vld [vmem:[%s212 + $0x8] sm:$0xff]
      %v229 = vld [vmem:[%s212 + $0x10] sm:$0xff]
      %v230 = vld [vmem:[%s212 + $0x18] sm:$0xff]
      %v231 = vld [vmem:[%s212 + $0x20] sm:$0xff]
      %v232 = vld [vmem:[%s212 + $0x28] sm:$0xff]
      %v233 = vld [vmem:[%s212 + $0x30] sm:$0xff]
      %v234 = vld [vmem:[%s212 + $0x38] sm:$0xff]
      %v235 = vld [vmem:[%s212 + $0x40] sm:$0xff]
      %v236 = vld [vmem:[%s212 + $0x48] sm:$0xff]
      %v237 = vld [vmem:[%s212 + $0x50] sm:$0xff]
      %v238 = vld [vmem:[%s212 + $0x58] sm:$0xff]
      %v239 = vld [vmem:[%s212 + $0x60] sm:$0xff]
      %v240 = vld [vmem:[%s212 + $0x68] sm:$0xff]
      %v241 = vld [vmem:[%s212 + $0x70] sm:$0xff]
      %v242 = vld [vmem:[%s212 + $0x78] sm:$0xff]
      %v243 = vld [vmem:[%s215] sm:$0x1]
      %v245 = vperm.slane %v243, 0
      %247 = vmatpush.msra.mxu0 %v242
      %248 = vmatpush.msra.mxu0 %v241
      %249 = vmatpush.msra.mxu0 %v240
      %250 = vmatpush.msra.mxu0 %v239
      %251 = vmatpush.msra.mxu0 %v238
      %252 = vmatpush.msra.mxu0 %v237
      %253 = vmatpush.msra.mxu0 %v236
      %254 = vmatpush.msra.mxu0 %v235
      %255 = vmatpush.msra.mxu0 %v234
      %256 = vmatpush.msra.mxu0 %v233
      %257 = vmatpush.msra.mxu0 %v232
      %258 = vmatpush.msra.mxu0 %v231
      %259 = vmatpush.msra.mxu0 %v230
      %260 = vmatpush.msra.mxu0 %v229
      %261 = vmatpush.msra.mxu0 %v228
      %262 = vmatpush.msra.mxu0 %v227
      %263 = vmatmul.f32.gmra.mxu0 %v225
      %v264 = vpop.f32.mrf.mxu0
      %v265 = vadd.f32 %v245, %v264
      %266 = vmatmul.f32.gmra.mxu0 %v226
      %v267 = vpop.f32.mrf.mxu0
      %v268 = vadd.f32 %v245, %v267
      %269 = vdwg.mxu0
      %vm270 = vcmask 130048
      %271 = vst.msk [vmem:[%s223] sm:$0xff] %vm270, %v265
      %272 = vst.msk [vmem:[%s223 + $0x8] sm:$0xff] %vm270, %v268
      %s273 = smul.u32 2, %s18
      %p274 = scmp.lt.s32.totalorder %s273, 3
      %s275 = scalar_select %p274, %s273, 3
      %p276 = scmp.lt.s32.totalorder %s19, 0
      %s277 = scalar_select %p276, %s19, 0
      %s278 = sadd.s32 %s277, %s275
      %s279 = smul.addr %s278, 8
      %s280 = scalar_lea.vmem %s3, %s279
      // Predicated region
      $region33: #{tpu_custom_call.1} parent=31 // pred_check
        %p281 = pneg %p124
      $region34: #{tpu_custom_call.1} parent=31 // pred_check_branch
        %283 = sbr.rel (%p281) target = $region36
      $region35: #{tpu_custom_call.1} parent=31 // pred_region
        %s284 = smul.u32 2, %s18
      $region36: #{tpu_custom_call.1} parent=31 // pred_fallthru
        _
    $region32: #{tpu_custom_call.1} parent=5 // pred_fallthru
      _
    %p285 = scmp.le.s32.totalorder 2, %s9
    // Predicated region
    $region37: #{tpu_custom_call.1} parent=5 // pred_check
      %p286 = pneg %p285
    $region38: #{tpu_custom_call.1} parent=5 // pred_check_branch
      %288 = sbr.rel (%p286) target = $region40
    $region39: #{tpu_custom_call.1} parent=5 // pred_region
      %s289 = ssub.s32 %s9, 2
      // Predicated region
      $region41: #{tpu_custom_call.1} parent=39 // pred_check
        %p290 = pneg %p130
      $region42: #{tpu_custom_call.1} parent=39 // pred_check_branch
        %292 = sbr.rel (%p290) target = $region44
      $region43: #{tpu_custom_call.1} parent=39 // pred_region
        %s293 = smul.u32 2, %s20
        %p294 = scmp.lt.s32.totalorder %s293, 3
        %s295 = scalar_select %p294, %s293, 3
        %p296 = scmp.lt.s32.totalorder %s21, 0
        %s297 = scalar_select %p296, %s21, 0
        %s298 = sadd.s32 %s297, %s295
        %s299 = smul.addr %s298, 8
        %s300 = scalar_lea.vmem %s3, %s299
      $region44: #{tpu_custom_call.1} parent=39 // pred_fallthru
        _
    $region40: #{tpu_custom_call.1} parent=5 // pred_fallthru
      _
  $region6: #{tpu_custom_call.1} parent=0 // loop_footer
    %s13 = sadd.s32 1, %s9
  $region7: #{tpu_custom_call.1} parent=0 // loop_footer_branch
    %8 = sbr.rel target = $region3
  $region8: #{tpu_custom_call.1} parent=0 // loop_exit
    _

</llo_original>
